<compile_context>
chip_gen: v7x
topology: tpu7x:2x2x1
jax: 0.10.0
libtpu: 0.0.40
codegen_flags: <defaults>
</compile_context>

<pallas_src>
import functools

import jax
import jax.numpy as jnp
from jax.experimental import pallas as pl
from jax.experimental.pallas import tpu as pltpu


# ----------------------------------------------------------------------------
# Soft-weight path: out[b, :] = sum_c x[b, c] * weight[c, :]   (MXU matmul)
# ----------------------------------------------------------------------------

def _soft_matmul_kernel(x_ref, w_ref, o_ref):
    # x_ref: (TB, C), w_ref: (C, D) (VMEM-resident across the grid), o_ref: (TB, D)
    o_ref[...] = jnp.dot(
        x_ref[...], w_ref[...], preferred_element_type=jnp.float32
    ).astype(o_ref.dtype)


# Conservative per-kernel VMEM tile budget: fits comfortably inside the scoped
# VMEM limit on every generation (v5e/v6e 128 MiB, v7x 64 MiB per TC).
_VMEM_TILE_BUDGET_BYTES = 8 * 1024 * 1024


def _pick_row_tile(B, C, D, in_itemsize):
    """Pick a row-tile TB: multiple of 8, <= B, sized to the VMEM budget."""
    if B <= 8:
        return B  # single block; block dims == full array dims (tiling-exempt)

    def vmem_est(tb):
        # double-buffered x tile + double-buffered f32 out tile + resident weight
        return 2 * tb * C * in_itemsize + 2 * tb * D * 4 + C * D * in_itemsize

    tb = 1024
    while tb > 8 and vmem_est(tb) > _VMEM_TILE_BUDGET_BYTES:
        tb //= 2
    return min(tb, (B // 8) * 8)  # keep TB a multiple of 8 and <= B


@functools.partial(jax.jit, static_argnames=("use_bf16",))
def _soft_concept_matmul(x_f32, weight, use_bf16=False):
    """x_f32: [B, nr_concepts] float32; weight: [nr_concepts, concept_dim] f32."""
    B, C = x_f32.shape
    C2, D = weight.shape
    assert C == C2

    # Optional bf16 inputs (exact for 0/1 one-hots) with f32 MXU accumulation.
    in_dtype = jnp.bfloat16 if use_bf16 else jnp.float32
    x_in = x_f32.astype(in_dtype)
    w_in = weight.astype(in_dtype)

    tb = _pick_row_tile(B, C, D, jnp.dtype(in_dtype).itemsize)
    grid = (pl.cdiv(B, tb),)

    return pl.pallas_call(
        _soft_matmul_kernel,
        out_shape=jax.ShapeDtypeStruct((B, D), jnp.float32),
        grid_spec=pl.GridSpec(
            grid=grid,
            in_specs=[
                pl.BlockSpec((tb, C), lambda i: (i, 0)),   # x: row tiles, pipelined
                pl.BlockSpec((C, D), lambda i: (0, 0)),    # weight: VMEM-resident
            ],
            out_specs=pl.BlockSpec((tb, D), lambda i: (i, 0)),
        ),
        compiler_params=pltpu.CompilerParams(
            # Row tiles are independent -> shard across both TCs on v7x.
            dimension_semantics=("parallel",),
        ),
    )(x_in, w_in)


# ----------------------------------------------------------------------------
# Lookup path: out[n, :] = weight[idx[n], :]
# Batched manual DMA gather: weight stays in HBM, indices live in SMEM
# (scalar prefetch), each grid step issues TB concurrent row DMAs.
# ----------------------------------------------------------------------------

_GATHER_ROWS_PER_STEP = 16  # rows gathered (and DMAs in flight) per grid step


def _make_gather_kernel(tb):
    def kernel(ids_ref, w_hbm, o_ref, sems):
        # ids_ref: SMEM [Np] int32 (scalar prefetch)
        # w_hbm:   HBM  [C, 1, D] (memory_space=pl.ANY, never auto-DMA'd)
        # o_ref:   VMEM [tb, 1, D] output block for this grid step
        # sems:    DMA semaphores, one per in-flight row copy
        base = pl.program_id(0) * tb
        # Issue all row DMAs first (keeps tb copies in flight to hide latency),
        # then wait for all of them before the pipeline writes the block back.
        for r in range(tb):
            pltpu.make_async_copy(
                w_hbm.at[ids_ref[base + r]], o_ref.at[r], sems.at[r]
            ).start()
        for r in range(tb):
            pltpu.make_async_copy(
                w_hbm.at[ids_ref[base + r]], o_ref.at[r], sems.at[r]
            ).wait()

    return kernel


@jax.jit
def _gather_rows(weight, flat_idx):
    """weight: [C, D]; flat_idx: [N] int32 -> [N, D] == weight[flat_idx] (bit-exact)."""
    C, D = weight.shape
    N = flat_idx.shape[0]
    tb = min(N, _GATHER_ROWS_PER_STEP)
    n_blocks = pl.cdiv(N, tb)
    Np = n_blocks * tb
    # Pad indices with 0 (a valid row); padded rows are sliced off afterwards.
    idx_p = jnp.pad(flat_idx, (0, Np - N))
    # View weight/output with a singleton middle dim so every (1, D) DMA
    # destination is tile-aligned and block last-two-dims equal full array dims.
    w3 = weight.reshape(C, 1, D)

    out = pl.pallas_call(
        _make_gather_kernel(tb),
        out_shape=jax.ShapeDtypeStruct((Np, 1, D), weight.dtype),
        grid_spec=pltpu.PrefetchScalarGridSpec(
            num_scalar_prefetch=1,            # flat indices land in SMEM pre-grid
            grid=(n_blocks,),
            in_specs=[pl.BlockSpec(memory_space=pl.ANY)],   # weight stays in HBM
            out_specs=pl.BlockSpec((tb, 1, D), lambda i, ids: (i, 0, 0)),
            scratch_shapes=[pltpu.SemaphoreType.DMA((tb,))],
        ),
        compiler_params=pltpu.CompilerParams(
            dimension_semantics=("arbitrary",),
        ),
    )(idx_p, w3)
    return out.reshape(Np, D)[:N]


# ----------------------------------------------------------------------------
# Module wrapper
# ----------------------------------------------------------------------------

class ConceptEmbeddingPallas:
    """JAX/Pallas port of the PyTorch ConceptEmbedding module."""

    def __init__(self, nr_concepts, concept_dim, key, use_bf16_matmul=False):
        self.nr_concepts = nr_concepts
        self.concept_dim = concept_dim
        # nn.Embedding default init: N(0, 1).
        self.weight = jax.random.normal(
            key, (nr_concepts, concept_dim), dtype=jnp.float32
        )
        # bf16 MXU inputs (f32 accumulate) for the soft-weight path on v6e/v7x;
        # default False to preserve exact f32 matmul semantics.
        self.use_bf16_matmul = use_bf16_matmul

    def __call__(self, x):
        if x.ndim == 2 and x.shape[1] == self.nr_concepts:
            # Soft-weight / one-hot matmul path -> [B, 1, concept_dim]
            emb = _soft_concept_matmul(
                x.astype(jnp.float32), self.weight, use_bf16=self.use_bf16_matmul
            )
            return emb[:, None, :]
        else:
            # Integer-index lookup path: bit-exact batched DMA gather of rows.
            # (Out-of-range indices are not checked, matching Pallas gather
            #  semantics rather than torch's runtime error.)
            idx = jnp.asarray(x).astype(jnp.int32)
            flat = idx.reshape(-1)                       # [N]
            rows = _gather_rows(self.weight, flat)       # [N, concept_dim]
            return rows.reshape(*idx.shape, self.concept_dim)


# ----------------------------------------------------------------------------
# Demo / self-check
# ----------------------------------------------------------------------------

if __name__ == "__main__":
    nr_concepts = 8
    concept_dim = 128   # multiple of 128 -> lane-dense output stores
    batch = 4

    root = jax.random.PRNGKey(0)
    k_w, k_idx, k_many = jax.random.split(root, 3)

    module = ConceptEmbeddingPallas(nr_concepts, concept_dim, k_w)

    # --- Soft-weight path: [batch, nr_concepts] float input -------------------
    idx = jax.random.randint(k_idx, (batch,), 0, nr_concepts)
    x_onehot = jax.nn.one_hot(idx, nr_concepts, dtype=jnp.float32)

    out = jax.block_until_ready(module(x_onehot))
    assert out.shape == (batch, 1, concept_dim), out.shape
    ref = (x_onehot @ module.weight)[:, None, :]
    assert jnp.allclose(out, ref, atol=1e-5, rtol=1e-5), float(
        jnp.max(jnp.abs(out - ref))
    )

    # --- Lookup path: 1D integer indices (single gather block) ----------------
    out2 = jax.block_until_ready(module(idx))
    ref2 = module.weight[idx]
    assert out2.shape == (batch, concept_dim), out2.shape
    assert jnp.array_equal(out2, ref2)  # gather is bit-exact

    # --- Lookup path: 2D integer indices (shape[1] != nr_concepts) ------------
    idx2d = idx.reshape(2, 2)
    out3 = jax.block_until_ready(module(idx2d))
    assert out3.shape == (2, 2, concept_dim), out3.shape
    assert jnp.array_equal(out3, module.weight[idx2d])

    # --- Lookup path: larger N (multi-block gather + padding path) ------------
    idx_many = jax.random.randint(k_many, (40,), 0, nr_concepts)  # N=40 -> 3 blocks of 16
    out4 = jax.block_until_ready(module(idx_many))
    assert out4.shape == (40, concept_dim), out4.shape
    assert jnp.array_equal(out4, module.weight[idx_many])

    print("KERNEL_OK")
</pallas_src>

<mosaic_0001>
module attributes {stable_mosaic.version = 11 : i64} {
  func.func @_soft_matmul_kernel(%arg0: i32, %arg1: memref<4x8xf32, #tpu.memory_space<vmem>>, %arg2: memref<8x128xf32, #tpu.memory_space<vmem>>, %arg3: memref<4x128xf32, #tpu.memory_space<vmem>>) attributes {dimension_semantics = [#tpu.dimension_semantics<parallel>], iteration_bounds = array<i64: 1>, scalar_prefetch = 0 : i64, scratch_operands = 0 : i64, tpu.core_type = #tpu.core_type<tc>, window_params = [{transform_indices = @transform_0, window_bounds = array<i64: 4, 8>}, {pipeline_mode = #tpu.pipeline_mode<synchronous>, transform_indices = @transform_1, window_bounds = array<i64: 8, 128>}, {transform_indices = @transform_2, window_bounds = array<i64: 4, 128>}]} {
    %c0 = arith.constant 0 : index
    %c0_0 = arith.constant 0 : index
    %0 = vector.load %arg1[%c0, %c0_0] : memref<4x8xf32, #tpu.memory_space<vmem>>, vector<4x8xf32>
    %c0_1 = arith.constant 0 : index
    %c0_2 = arith.constant 0 : index
    %1 = vector.load %arg2[%c0_1, %c0_2] : memref<8x128xf32, #tpu.memory_space<vmem>>, vector<8x128xf32>
    %cst = arith.constant dense<0.000000e+00> : vector<4x128xf32>
    %2 = tpu.matmul %0, %1, %cst {dimension_numbers = #tpu.dot_dimension_numbers<[1], [0], [0], [1], [0, 0, 1, 1], [], []>} : vector<4x8xf32>, vector<8x128xf32>, vector<4x128xf32> -> vector<4x128xf32>
    %c0_3 = arith.constant 0 : index
    %c0_4 = arith.constant 0 : index
    %3 = vector.load %arg3[%c0_3, %c0_4] : memref<4x128xf32, #tpu.memory_space<vmem>>, vector<4x128xf32>
    tpu.vector_store %arg3[%c0_3, %c0_4], %2 {strides = array<i32>} : memref<4x128xf32, #tpu.memory_space<vmem>>, vector<4x128xf32>,
    return
  }
  func.func @transform_0(%arg0: i32) -> (i32, i32) {
    %c0_i32 = arith.constant 0 : i32
    %c0_i32_0 = arith.constant 0 : i32
    return %arg0, %c0_i32 : i32, i32
  }
  func.func @transform_1(%arg0: i32) -> (i32, i32) {
    %c0_i32 = arith.constant 0 : i32
    %c0_i32_0 = arith.constant 0 : i32
    %c0_i32_1 = arith.constant 0 : i32
    return %c0_i32, %c0_i32_0 : i32, i32
  }
  func.func @transform_2(%arg0: i32) -> (i32, i32) {
    %c0_i32 = arith.constant 0 : i32
    %c0_i32_0 = arith.constant 0 : i32
    return %arg0, %c0_i32 : i32, i32
  }
}

</mosaic_0001>

<llo_original>
// kernel: _soft_concept_matmul.1
$region0: #{_soft_concept_matmul.1}
  #allocation0 [shape = 'u32[]', space=smem, size = 0x4, offset = 0x4, fixed_abs, tag = 'smem constant byte address 0x4 - core index']
  #allocation1 [shape = 'u32[144,128]{1,0:T(1,128)}', space=vmem, size = 0x12000, scoped, tag = 'internal scratch']
  %s0 = inlined_call_operand.hbm [shape: f32[4,8], index: 0, kind: input, shape index: {}]
  %s1 = inlined_call_operand.hbm [shape: f32[8,128], index: 1, kind: input, shape index: {}]
  %s2 = inlined_call_operand.hbm [shape: f32[4,128], index: 2, kind: output, shape index: {}]
  %s3 = sld [smem:[#allocation0]]
  $region26: #{_soft_concept_matmul.1} parent=0
    _
  %s5 = ssub.s32 1, %s3
  %s6 = scalar_select 0, %s5, %s3
  $region1: #{_soft_concept_matmul.1} parent=0
    #allocation2 [shape = 'u8[2048]{0}', space=vmem, size = 0x800, scoped, tag = 'input window, operand 0, single buffered']
    #allocation3 [shape = 's32[1]{0}', space=sflag, size = 0x4, scoped, tag = 'scoped memory for _soft_concept_matmul.1']
    #allocation4 [shape = 's32[1]{0}', space=sflag, size = 0x4, scoped, tag = 'scoped memory for _soft_concept_matmul.1']
    #allocation5 [shape = 'u8[4096]{0}', space=vmem, size = 0x1000, scoped, tag = 'input window, operand 1, single buffered']
    #allocation6 [shape = 's32[1]{0}', space=sflag, size = 0x4, scoped, tag = 'scoped memory for _soft_concept_matmul.1']
    #allocation7 [shape = 'u8[2048]{0}', space=vmem, size = 0x800, scoped, tag = 'output window, operand 0, single buffered']
    %7 = vsyncpa [#allocation3], 0
    %8 = vsyncpa [#allocation6], 0
    %9 = vsyncpa [#allocation4], 0
    // Predicated region
    $region2: #{_soft_concept_matmul.1} parent=1 // pred_check
      _
    $region3: #{_soft_concept_matmul.1} parent=1 // pred_check_branch
      %11 = sbr.rel (0) target = $region5
    $region4: #{_soft_concept_matmul.1} parent=1 // pred_region
      %s13 = ssub.s32 64, 64
      %14 = vsyncadd [#allocation3], %s13
      %s16 = sshll.u32 [#allocation2], 4
      %s17 = int_to_ptr.vmem [resolvable:$true] %s16
      %19 = dma.hbm_to_vmem [thread:$0]  %s0, 64, %s17, [#allocation3]
    $region5: #{_soft_concept_matmul.1} parent=1 // pred_fallthru
      _
    // Predicated region
    $region6: #{_soft_concept_matmul.1} parent=1 // pred_check
      _
    $region7: #{_soft_concept_matmul.1} parent=1 // pred_check_branch
      %21 = sbr.rel (0) target = $region9
    $region8: #{_soft_concept_matmul.1} parent=1 // pred_region
      %s23 = ssub.s32 128, 128
      %24 = vsyncadd [#allocation6], %s23
      %s26 = sshll.u32 [#allocation5], 4
      %s27 = int_to_ptr.vmem [resolvable:$true] %s26
      %29 = dma.hbm_to_vmem [thread:$0]  %s1, 128, %s27, [#allocation6]
    $region9: #{_soft_concept_matmul.1} parent=1 // pred_fallthru
      _
    // Predicated region
    $region10: #{_soft_concept_matmul.1} parent=1 // pred_check
      _
    $region11: #{_soft_concept_matmul.1} parent=1 // pred_check_branch
      %31 = sbr.rel (0) target = $region13
    $region12: #{_soft_concept_matmul.1} parent=1 // pred_region
      %32 = dma.done [#allocation3], 64
    $region13: #{_soft_concept_matmul.1} parent=1 // pred_fallthru
      _
    // Predicated region
    $region14: #{_soft_concept_matmul.1} parent=1 // pred_check
      _
    $region15: #{_soft_concept_matmul.1} parent=1 // pred_check_branch
      %34 = sbr.rel (0) target = $region17
    $region16: #{_soft_concept_matmul.1} parent=1 // pred_region
      %35 = dma.done [#allocation6], 128
    $region17: #{_soft_concept_matmul.1} parent=1 // pred_fallthru
      _
    %v36 = vld [vmem:[#allocation2] sm:$0xf]
    %v37 = vld [vmem:[#allocation5] sm:$0xff]
    %vm38 = vcmask 64512
    %v40 = vsel %vm38, %v36, 0
    %42 = vmatprep.subr.mxu0 0.0
    %43 = vmatpush1.msra.mxu0 %v37
    %44 = vmatprep.subr.mxu0 0.0
    %45 = vmatpush1.msra.mxu0 0.0
    %46 = vmatprep.subr.mxu0 0.0
    %47 = vmatpush1.msra.mxu0 0.0
    %48 = vmatprep.subr.mxu0 0.0
    %49 = vmatpush1.msra.mxu0 0.0
    %50 = vmatprep.subr.mxu0 0.0
    %51 = vmatpush1.msra.mxu0 0.0
    %52 = vmatprep.subr.mxu0 0.0
    %53 = vmatpush1.msra.mxu0 0.0
    %54 = vmatprep.subr.mxu0 0.0
    %55 = vmatpush1.msra.mxu0 0.0
    %56 = vmatprep.subr.mxu0 0.0
    %57 = vmatpush1.msra.mxu0 0.0
    %58 = vmatprep.subr.mxu0 0.0
    %59 = vmatpush1.msra.mxu0 0.0
    %60 = vmatprep.subr.mxu0 0.0
    %61 = vmatpush1.msra.mxu0 0.0
    %62 = vmatprep.subr.mxu0 0.0
    %63 = vmatpush1.msra.mxu0 0.0
    %64 = vmatprep.subr.mxu0 0.0
    %65 = vmatpush1.msra.mxu0 0.0
    %66 = vmatprep.subr.mxu0 0.0
    %67 = vmatpush1.msra.mxu0 0.0
    %68 = vmatprep.subr.mxu0 0.0
    %69 = vmatpush1.msra.mxu0 0.0
    %70 = vmatprep.subr.mxu0 0.0
    %71 = vmatpush1.msra.mxu0 0.0
    %72 = vmatprep.subr.mxu0 0.0
    %73 = vmatpush1.msra.mxu0 0.0
    %74 = vmatprep.subr.mxu0 0.0
    %75 = vmatpush1.msra.mxu0 0.0
    %76 = vmatprep.subr.mxu0 0.0
    %77 = vmatpush1.msra.mxu0 0.0
    %78 = vmatprep.subr.mxu0 0.0
    %79 = vmatpush1.msra.mxu0 0.0
    %80 = vmatprep.subr.mxu0 0.0
    %81 = vmatpush1.msra.mxu0 0.0
    %82 = vmatprep.subr.mxu0 0.0
    %83 = vmatpush1.msra.mxu0 0.0
    %84 = vmatprep.subr.mxu0 0.0
    %85 = vmatpush1.msra.mxu0 0.0
    %86 = vmatprep.subr.mxu0 0.0
    %87 = vmatpush1.msra.mxu0 0.0
    %88 = vmatprep.subr.mxu0 0.0
    %89 = vmatpush1.msra.mxu0 0.0
    %90 = vmatprep.subr.mxu0 0.0
    %91 = vmatpush1.msra.mxu0 0.0
    %92 = vmatprep.subr.mxu0 0.0
    %93 = vmatpush1.msra.mxu0 0.0
    %94 = vmatprep.subr.mxu0 0.0
    %95 = vmatpush1.msra.mxu0 0.0
    %96 = vmatprep.subr.mxu0 0.0
    %97 = vmatpush1.msra.mxu0 0.0
    %98 = vmatprep.subr.mxu0 0.0
    %99 = vmatpush1.msra.mxu0 0.0
    %100 = vmatprep.subr.mxu0 0.0
    %101 = vmatpush1.msra.mxu0 0.0
    %102 = vmatprep.subr.mxu0 0.0
    %103 = vmatpush1.msra.mxu0 0.0
    %104 = vmatprep.subr.mxu0 0.0
    %105 = vmatpush1.msra.mxu0 0.0
    %106 = vmatprep.mubr.f32.mxu0 0.0
    %107 = vmatmul.mubr.f32.gmra.mrb[0].mxu0 %v40
    %v108 = vpop.f32.mrb[0].mxu0
    %v109 = vadd.f32 0.0, %v108
    %v110 = vpop.f32.mrb[0].mxu0
    %111 = vdwg.mxu0
    %112 = vst [vmem:[#allocation7] sm:$0xf] %v109
    // Predicated region
    $region18: #{_soft_concept_matmul.1} parent=1 // pred_check
      _
    $region19: #{_soft_concept_matmul.1} parent=1 // pred_check_branch
      %114 = sbr.rel (0) target = $region21
    $region20: #{_soft_concept_matmul.1} parent=1 // pred_region
      %s116 = ssub.s32 64, 64
      %117 = vsyncadd [#allocation4], %s116
      %s119 = sshll.u32 [#allocation7], 4
      %s120 = int_to_ptr.vmem [resolvable:$true] %s119
      %122 = dma.vmem_to_hbm [thread:$0]  %s120, 64, %s2, [#allocation4]
    $region21: #{_soft_concept_matmul.1} parent=1 // pred_fallthru
      _
    // Predicated region
    $region22: #{_soft_concept_matmul.1} parent=1 // pred_check
      _
    $region23: #{_soft_concept_matmul.1} parent=1 // pred_check_branch
      %124 = sbr.rel (0) target = $region25
    $region24: #{_soft_concept_matmul.1} parent=1 // pred_region
      %125 = dma.done [#allocation4], 64
    $region25: #{_soft_concept_matmul.1} parent=1 // pred_fallthru
      _
    %126 = vsyncpa [#allocation3], 1
    %127 = vsyncpa [#allocation6], 1
    %128 = vsyncpa [#allocation4], 1

</llo_original>
